<compile_context>
chip_gen: v6e
topology: v6e:2x2x1
jax: 0.10.0
libtpu: 0.0.40
codegen_flags: <defaults>
</compile_context>

<pallas_src>
import numpy as np
import jax
import jax.numpy as jnp
from jax.experimental import pallas as pl
from jax.experimental.pallas import tpu as pltpu

# ------------------------- config (small, consistent with module) -------------------
B = 4            # batch
C = 4            # image channels
HW = 16          # spatial H = W
L = 8            # max caption length
ENC_DIM = 32     # encoder_dim
EMB_DIM = 32     # embed_dim (must equal ENC_DIM: LSTMCell consumes both inputs)
DEC_DIM = 32     # decoder_dim
VOCAB = 128      # vocab_size

B_PAD = 8                # batch padded to sublane height
T_STEPS = L - 1          # fixed decode-step count (upper bound of max(decode_lengths))
GATE = 4 * DEC_DIM       # 128 -> lane-dense gate vector


# ------------------------------ Pallas kernels ---------------------------------------
def prep_kernel(x_ref, wenc_ref, benc_ref, emb_ref, wih_ref, blstm_ref, xg_ref):
    # Encoder: global pool (1/(H*W) pre-folded into wenc) + linear to ENC_DIM,
    # then the hoisted input-gate projection for the init step and all T decode steps.
    pooled = jnp.sum(x_ref[...], axis=-1)                                    # (B_PAD, C)
    enc = jnp.dot(pooled, wenc_ref[...],
                  preferred_element_type=jnp.float32) + benc_ref[...]        # (B_PAD, ENC)
    b = blstm_ref[...]                                                       # (1, 4H)
    xg_ref[0:B_PAD, :] = jnp.dot(enc, wih_ref[...],
                                 preferred_element_type=jnp.float32) + b
    xg_ref[B_PAD:, :] = jnp.dot(emb_ref[...], wih_ref[...],
                                preferred_element_type=jnp.float32) + b


def decode_kernel(xg_ref, dl_ref, whh_ref, wfc_ref, bfc_ref, preds_ref, h_sc, c_sc):
    # One grid step = one LSTMCell step. Step 0 consumes the encoder output (image-init
    # step, preds discarded); steps 1..T consume the caption embeddings.
    t = pl.program_id(0)

    @pl.when(t == 0)
    def _init():
        h_sc[...] = jnp.zeros_like(h_sc)
        c_sc[...] = jnp.zeros_like(c_sc)

    h = h_sc[...]
    c = c_sc[...]

    # gates = (x @ W_ih + b) [precomputed] + h @ W_hh   (PyTorch gate order i, f, g, o)
    gates = xg_ref[...] + jnp.dot(h.astype(jnp.bfloat16), whh_ref[...],
                                  preferred_element_type=jnp.float32)        # (B_PAD, 4H)

    # Full-vreg activations (EUP), blended with a per-lane mask: lanes [2H, 3H) = gate g.
    lane = jax.lax.broadcasted_iota(jnp.int32, gates.shape, 1)
    is_g = jnp.logical_and(lane >= 2 * DEC_DIM, lane < 3 * DEC_DIM)
    act = jnp.where(is_g, jnp.tanh(gates), jax.nn.sigmoid(gates))

    i = act[:, 0 * DEC_DIM:1 * DEC_DIM]
    f = act[:, 1 * DEC_DIM:2 * DEC_DIM]
    g = act[:, 2 * DEC_DIM:3 * DEC_DIM]
    o = act[:, 3 * DEC_DIM:4 * DEC_DIM]

    c_new = f * c + i * g
    h_new = o * jnp.tanh(c_new)

    # Active rows: step 0 updates everything (decode_lengths >= 0 > -1); steps t>=1
    # mirror the PyTorch `[:batch_size_t]` slicing (decode_lengths > t-1).
    active = dl_ref[...] > (t - 1)                                           # (B_PAD, 1)
    h_sc[...] = jnp.where(active, h_new, h)
    c_sc[...] = jnp.where(active, c_new, c)

    @pl.when(t > 0)
    def _fc():
        # preds = fc(dropout(h_new)); dropout is identity in eval. Inactive rows -> 0.
        logits = (jnp.dot(h_new.astype(jnp.bfloat16), wfc_ref[...],
                          preferred_element_type=jnp.float32) + bfc_ref[...])
        preds_ref[...] = jnp.where(active, logits, 0.0)


# ------------------------------ pallas_call wrappers ----------------------------------
_vmem = pl.BlockSpec(memory_space=pltpu.MemorySpace.VMEM)

_prep_call = pl.pallas_call(
    prep_kernel,
    out_shape=jax.ShapeDtypeStruct(((T_STEPS + 1) * B_PAD, GATE), jnp.float32),
    in_specs=[_vmem] * 6,
    out_specs=_vmem,
)

_decode_call = pl.pallas_call(
    decode_kernel,
    out_shape=jax.ShapeDtypeStruct((T_STEPS * B_PAD, VOCAB), jnp.float32),
    grid_spec=pltpu.PrefetchScalarGridSpec(
        num_scalar_prefetch=0,
        grid=(T_STEPS + 1,),
        in_specs=[
            pl.BlockSpec((B_PAD, GATE), lambda t: (t, 0)),       # per-step precomputed x-gates
            pl.BlockSpec((B_PAD, 1), lambda t: (0, 0)),          # decode_lengths (resident)
            pl.BlockSpec((DEC_DIM, GATE), lambda t: (0, 0)),     # w_hh  (resident, bf16)
            pl.BlockSpec((DEC_DIM, VOCAB), lambda t: (0, 0)),    # w_fc  (resident, bf16)
            pl.BlockSpec((1, VOCAB), lambda t: (0, 0)),          # b_fc  (resident)
        ],
        # steps 1..T write preds blocks 0..T-1; step 0 shares block 0 (overwritten at t=1)
        out_specs=pl.BlockSpec((B_PAD, VOCAB), lambda t: (jnp.maximum(t - 1, 0), 0)),
        scratch_shapes=[pltpu.VMEM((B_PAD, DEC_DIM), jnp.float32),   # h
                        pltpu.VMEM((B_PAD, DEC_DIM), jnp.float32)],  # c
    ),
    compiler_params=pltpu.CompilerParams(dimension_semantics=("arbitrary",)),
)


# --------------------------------- model params ---------------------------------------
def init_params(key):
    ks = jax.random.split(key, 8)
    s = 1.0 / float(np.sqrt(DEC_DIM))
    w_hh = jax.random.uniform(ks[3], (DEC_DIM, GATE), jnp.float32, -s, s)
    w_fc = jax.random.uniform(ks[6], (DEC_DIM, VOCAB), jnp.float32, -0.1, 0.1)
    return {
        # encoder replacement (pool + linear); the 1/(H*W) mean scale is folded into w_enc
        "w_enc": jax.random.uniform(ks[0], (C, ENC_DIM), jnp.float32, -0.1, 0.1)
                 / float(HW * HW),
        "b_enc": jnp.zeros((1, ENC_DIM), jnp.float32),
        # embedding table
        "embedding": jax.random.normal(ks[1], (VOCAB, EMB_DIM), jnp.float32) * 0.1,
        # LSTMCell params (stored transposed: (in, 4H) / (H, 4H); gate order i,f,g,o)
        "w_ih": jax.random.uniform(ks[2], (ENC_DIM, GATE), jnp.float32, -s, s),
        "w_hh": w_hh.astype(jnp.bfloat16),        # MXU operand in bf16, f32 accumulate
        "b_lstm": (jax.random.uniform(ks[4], (1, GATE), jnp.float32, -s, s)
                   + jax.random.uniform(ks[5], (1, GATE), jnp.float32, -s, s)),
        # fc head: weight uniform(-0.1, 0.1), bias 0 (reset_parameters)
        "w_fc": w_fc.astype(jnp.bfloat16),
        "b_fc": jnp.zeros((1, VOCAB), jnp.float32),
    }


# --------------------------------- model forward --------------------------------------
def nic_forward(x, caps, cap_lens, params):
    """Inference-mode Nic forward. Returns (scores, decode_lengths, sort_ind).

    scores: (B, L-1, VOCAB); columns past a caption's decode length are zero, matching
    the zero-initialized predictions tensor of the PyTorch reference. Fully jittable
    (no host synchronization)."""
    b, c, h, w = x.shape

    # sort by caption length, descending (PyTorch .sort(descending=True))
    lengths = cap_lens[:, 0]
    sort_ind = jnp.argsort(-lengths)
    lengths_sorted = lengths[sort_ind]
    decode_lengths = lengths_sorted - 1                       # stays on device
    caps_sorted = caps[sort_ind]
    x_sorted = x[sort_ind]

    # pad batch to sublane height 8; padded rows are inactive (decode_length = 0)
    pad = B_PAD - b
    x3 = jnp.pad(x_sorted.reshape(b, c, h * w), ((0, pad), (0, 0), (0, 0)))
    caps_p = jnp.pad(caps_sorted, ((0, pad), (0, 0)))
    dl_p = jnp.pad(decode_lengths, (0, pad)).astype(jnp.int32).reshape(B_PAD, 1)

    # embedding gather (XLA), laid out time-major + flattened so the whole input
    # projection is a single MXU matmul inside the prep kernel
    emb = jnp.take(params["embedding"], caps_p[:, :T_STEPS], axis=0)        # (B_PAD, T, E)
    emb_flat = jnp.transpose(emb, (1, 0, 2)).reshape(T_STEPS * B_PAD, EMB_DIM)

    # prep kernel: encoder (pool + linear) fused with the hoisted x @ W_ih + b projection
    xg = _prep_call(x3, params["w_enc"], params["b_enc"], emb_flat,
                    params["w_ih"], params["b_lstm"])                       # ((T+1)*B_PAD, 4H)

    # fused decode loop: one pallas_call over time, h/c resident in VMEM scratch
    preds_flat = _decode_call(xg, dl_p, params["w_hh"], params["w_fc"], params["b_fc"])
    preds = preds_flat.reshape(T_STEPS, B_PAD, VOCAB).transpose(1, 0, 2)[:b]
    return preds, decode_lengths, sort_ind


# -------------------------------------- main -------------------------------------------
if __name__ == "__main__":
    key = jax.random.PRNGKey(0)
    k_img, k_cap, k_len, k_par = jax.random.split(key, 4)

    x = jax.random.normal(k_img, (B, C, HW, HW), jnp.float32)          # NCHW, like PyTorch
    caps = jax.random.randint(k_cap, (B, L), 0, VOCAB, dtype=jnp.int32)
    cap_lens = jax.random.randint(k_len, (B, 1), 2, L + 1, dtype=jnp.int32)

    params = init_params(k_par)

    fwd = jax.jit(nic_forward)
    scores, decode_lengths, sort_ind = fwd(x, caps, cap_lens, params)
    scores = jax.block_until_ready(scores)

    assert scores.shape == (B, T_STEPS, VOCAB)
    assert bool(jnp.all(jnp.isfinite(scores)))
    print("KERNEL_OK")
</pallas_src>

<mosaic_0001>
module attributes {stable_mosaic.version = 11 : i64} {
  func.func @prep_kernel(%arg0: memref<8x4x256xf32, #tpu.memory_space<vmem>>, %arg1: memref<4x32xf32, #tpu.memory_space<vmem>>, %arg2: memref<1x32xf32, #tpu.memory_space<vmem>>, %arg3: memref<56x32xf32, #tpu.memory_space<vmem>>, %arg4: memref<32x128xf32, #tpu.memory_space<vmem>>, %arg5: memref<1x128xf32, #tpu.memory_space<vmem>>, %arg6: memref<64x128xf32, #tpu.memory_space<vmem>>) attributes {dimension_semantics = [], scalar_prefetch = 0 : i64, scratch_operands = 0 : i64, tpu.core_type = #tpu.core_type<tc>} {
    %c0 = arith.constant 0 : index
    %c0_0 = arith.constant 0 : index
    %c0_1 = arith.constant 0 : index
    %0 = vector.load %arg0[%c0, %c0_0, %c0_1] : memref<8x4x256xf32, #tpu.memory_space<vmem>>, vector<8x4x256xf32>
    %cst = arith.constant dense<0.000000e+00> : vector<8x4xf32>
    %1 = vector.multi_reduction <add>, %0, %cst [2] : vector<8x4x256xf32> to vector<8x4xf32>
    %c0_2 = arith.constant 0 : index
    %c0_3 = arith.constant 0 : index
    %2 = vector.load %arg1[%c0_2, %c0_3] : memref<4x32xf32, #tpu.memory_space<vmem>>, vector<4x32xf32>
    %cst_4 = arith.constant dense<0.000000e+00> : vector<8x32xf32>
    %3 = tpu.matmul %1, %2, %cst_4 {dimension_numbers = #tpu.dot_dimension_numbers<[1], [0], [0], [1], [0, 0, 1, 1], [], []>} : vector<8x4xf32>, vector<4x32xf32>, vector<8x32xf32> -> vector<8x32xf32>
    %c0_5 = arith.constant 0 : index
    %c0_6 = arith.constant 0 : index
    %4 = vector.load %arg2[%c0_5, %c0_6] : memref<1x32xf32, #tpu.memory_space<vmem>>, vector<1x32xf32>
    %5 = vector.broadcast %4 : vector<1x32xf32> to vector<8x32xf32>
    %6 = arith.addf %3, %5 : vector<8x32xf32>
    %c0_7 = arith.constant 0 : index
    %c0_8 = arith.constant 0 : index
    %7 = vector.load %arg5[%c0_7, %c0_8] : memref<1x128xf32, #tpu.memory_space<vmem>>, vector<1x128xf32>
    %c0_9 = arith.constant 0 : index
    %c0_10 = arith.constant 0 : index
    %8 = vector.load %arg4[%c0_9, %c0_10] : memref<32x128xf32, #tpu.memory_space<vmem>>, vector<32x128xf32>
    %cst_11 = arith.constant dense<0.000000e+00> : vector<8x128xf32>
    %9 = tpu.matmul %6, %8, %cst_11 {dimension_numbers = #tpu.dot_dimension_numbers<[1], [0], [0], [1], [0, 0, 1, 1], [], []>} : vector<8x32xf32>, vector<32x128xf32>, vector<8x128xf32> -> vector<8x128xf32>
    %10 = vector.broadcast %7 : vector<1x128xf32> to vector<8x128xf32>
    %11 = arith.addf %9, %10 : vector<8x128xf32>
    %c0_12 = arith.constant 0 : index
    %c0_13 = arith.constant 0 : index
    %12 = vector.load %arg6[%c0_12, %c0_13] : memref<64x128xf32, #tpu.memory_space<vmem>>, vector<8x128xf32>
    tpu.vector_store %arg6[%c0_12, %c0_13], %11 {strides = array<i32>} : memref<64x128xf32, #tpu.memory_space<vmem>>, vector<8x128xf32>,
    %c0_14 = arith.constant 0 : index
    %c0_15 = arith.constant 0 : index
    %13 = vector.load %arg3[%c0_14, %c0_15] : memref<56x32xf32, #tpu.memory_space<vmem>>, vector<56x32xf32>
    %c0_16 = arith.constant 0 : index
    %c0_17 = arith.constant 0 : index
    %14 = vector.load %arg4[%c0_16, %c0_17] : memref<32x128xf32, #tpu.memory_space<vmem>>, vector<32x128xf32>
    %cst_18 = arith.constant dense<0.000000e+00> : vector<56x128xf32>
    %15 = tpu.matmul %13, %14, %cst_18 {dimension_numbers = #tpu.dot_dimension_numbers<[1], [0], [0], [1], [0, 0, 1, 1], [], []>} : vector<56x32xf32>, vector<32x128xf32>, vector<56x128xf32> -> vector<56x128xf32>
    %16 = vector.broadcast %7 : vector<1x128xf32> to vector<56x128xf32>
    %17 = arith.addf %15, %16 : vector<56x128xf32>
    %c8 = arith.constant 8 : index
    %c0_19 = arith.constant 0 : index
    %18 = vector.load %arg6[%c8, %c0_19] : memref<64x128xf32, #tpu.memory_space<vmem>>, vector<56x128xf32>
    tpu.vector_store %arg6[%c8, %c0_19], %17 {strides = array<i32>} : memref<64x128xf32, #tpu.memory_space<vmem>>, vector<56x128xf32>,
    return
  }
}

module attributes {stable_mosaic.version = 11 : i64} {
  func.func @decode_kernel(%arg0: i32, %arg1: memref<8x128xf32, #tpu.memory_space<vmem>>, %arg2: memref<8x1xi32, #tpu.memory_space<vmem>>, %arg3: memref<32x128xbf16, #tpu.memory_space<vmem>>, %arg4: memref<32x128xbf16, #tpu.memory_space<vmem>>, %arg5: memref<1x128xf32, #tpu.memory_space<vmem>>, %arg6: memref<8x128xf32, #tpu.memory_space<vmem>>, %arg7: memref<8x32xf32, #tpu.memory_space<vmem>>, %arg8: memref<8x32xf32, #tpu.memory_space<vmem>>) attributes {dimension_semantics = [#tpu.dimension_semantics<arbitrary>], iteration_bounds = array<i64: 8>, scalar_prefetch = 0 : i64, scratch_operands = 2 : i64, tpu.core_type = #tpu.core_type<tc>, window_params = [{transform_indices = @transform_0, window_bounds = array<i64: 8, 128>}, {pipeline_mode = #tpu.pipeline_mode<synchronous>, transform_indices = @transform_1, window_bounds = array<i64: 8, 1>}, {pipeline_mode = #tpu.pipeline_mode<synchronous>, transform_indices = @transform_2, window_bounds = array<i64: 32, 128>}, {pipeline_mode = #tpu.pipeline_mode<synchronous>, transform_indices = @transform_3, window_bounds = array<i64: 32, 128>}, {pipeline_mode = #tpu.pipeline_mode<synchronous>, transform_indices = @transform_4, window_bounds = array<i64: 1, 128>}, {transform_indices = @transform_5, window_bounds = array<i64: 8, 128>}]} {
    %c0_i32 = arith.constant 0 : i32
    %0 = arith.cmpi eq, %arg0, %c0_i32 : i32
    %1 = arith.extui %0 : i1 to i32
    %c0_i32_0 = arith.constant 0 : i32
    %2 = arith.cmpi ne, %1, %c0_i32_0 : i32
    scf.if %2 {
      %cst_17 = arith.constant 0.000000e+00 : f32
      %47 = vector.broadcast %cst_17 : f32 to vector<8x32xf32>
      %c0_18 = arith.constant 0 : index
      %c0_19 = arith.constant 0 : index
      %48 = vector.load %arg7[%c0_18, %c0_19] : memref<8x32xf32, #tpu.memory_space<vmem>>, vector<8x32xf32>
      tpu.vector_store %arg7[%c0_18, %c0_19], %47 {strides = array<i32>} : memref<8x32xf32, #tpu.memory_space<vmem>>, vector<8x32xf32>,
      %cst_20 = arith.constant 0.000000e+00 : f32
      %49 = vector.broadcast %cst_20 : f32 to vector<8x32xf32>
      %c0_21 = arith.constant 0 : index
      %c0_22 = arith.constant 0 : index
      %50 = vector.load %arg8[%c0_21, %c0_22] : memref<8x32xf32, #tpu.memory_space<vmem>>, vector<8x32xf32>
      tpu.vector_store %arg8[%c0_21, %c0_22], %49 {strides = array<i32>} : memref<8x32xf32, #tpu.memory_space<vmem>>, vector<8x32xf32>,
    } else {
    }
    %c0 = arith.constant 0 : index
    %c0_1 = arith.constant 0 : index
    %3 = vector.load %arg7[%c0, %c0_1] : memref<8x32xf32, #tpu.memory_space<vmem>>, vector<8x32xf32>
    %c0_2 = arith.constant 0 : index
    %c0_3 = arith.constant 0 : index
    %4 = vector.load %arg8[%c0_2, %c0_3] : memref<8x32xf32, #tpu.memory_space<vmem>>, vector<8x32xf32>
    %c0_4 = arith.constant 0 : index
    %c0_5 = arith.constant 0 : index
    %5 = vector.load %arg1[%c0_4, %c0_5] : memref<8x128xf32, #tpu.memory_space<vmem>>, vector<8x128xf32>
    %6 = arith.truncf %3 : vector<8x32xf32> to vector<8x32xbf16>
    %c0_6 = arith.constant 0 : index
    %c0_7 = arith.constant 0 : index
    %7 = vector.load %arg3[%c0_6, %c0_7] : memref<32x128xbf16, #tpu.memory_space<vmem>>, vector<32x128xbf16>
    %cst = arith.constant dense<0.000000e+00> : vector<8x128xf32>
    %8 = tpu.matmul %6, %7, %cst {dimension_numbers = #tpu.dot_dimension_numbers<[1], [0], [0], [1], [0, 0, 1, 1], [], []>} : vector<8x32xbf16>, vector<32x128xbf16>, vector<8x128xf32> -> vector<8x128xf32>
    %9 = arith.addf %5, %8 : vector<8x128xf32>
    %10 = tpu.iota {dimensions = array<i32: 1>} : vector<8x128xi32>
    %c64_i32 = arith.constant 64 : i32
    %11 = vector.broadcast %c64_i32 : i32 to vector<8x128xi32>
    %12 = arith.cmpi sge, %10, %11 : vector<8x128xi32>
    %c96_i32 = arith.constant 96 : i32
    %13 = vector.broadcast %c96_i32 : i32 to vector<8x128xi32>
    %14 = arith.cmpi slt, %10, %13 : vector<8x128xi32>
    %15 = arith.andi %12, %14 : vector<8x128xi1>
    %16 = math.tanh %9 : vector<8x128xf32>
    %17 = arith.negf %9 : vector<8x128xf32>
    %18 = math.exp %17 : vector<8x128xf32>
    %cst_8 = arith.constant 1.000000e+00 : f32
    %19 = vector.broadcast %cst_8 : f32 to vector<8x128xf32>
    %20 = arith.addf %19, %18 : vector<8x128xf32>
    %21 = arith.divf %19, %20 : vector<8x128xf32>
    %22 = arith.select %15, %16, %21 : vector<8x128xi1>, vector<8x128xf32>
    %23 = vector.extract_strided_slice %22 {offsets = [0, 0], sizes = [8, 32], strides = [1, 1]} : vector<8x128xf32> to vector<8x32xf32>
    %24 = vector.extract_strided_slice %22 {offsets = [0, 32], sizes = [8, 32], strides = [1, 1]} : vector<8x128xf32> to vector<8x32xf32>
    %25 = vector.extract_strided_slice %22 {offsets = [0, 64], sizes = [8, 32], strides = [1, 1]} : vector<8x128xf32> to vector<8x32xf32>
    %26 = vector.extract_strided_slice %22 {offsets = [0, 96], sizes = [8, 32], strides = [1, 1]} : vector<8x128xf32> to vector<8x32xf32>
    %27 = arith.mulf %24, %4 : vector<8x32xf32>
    %28 = arith.mulf %23, %25 : vector<8x32xf32>
    %29 = arith.addf %27, %28 : vector<8x32xf32>
    %30 = math.tanh %29 : vector<8x32xf32>
    %31 = arith.mulf %26, %30 : vector<8x32xf32>
    %c0_9 = arith.constant 0 : index
    %c0_10 = arith.constant 0 : index
    %32 = vector.load %arg2[%c0_9, %c0_10] : memref<8x1xi32, #tpu.memory_space<vmem>>, vector<8x1xi32>
    %c1_i32 = arith.constant 1 : i32
    %33 = arith.subi %arg0, %c1_i32 : i32
    %34 = vector.broadcast %33 : i32 to vector<8x1xi32>
    %35 = arith.cmpi sgt, %32, %34 : vector<8x1xi32>
    %36 = vector.shape_cast %35 : vector<8x1xi1> to vector<8x1xi1>
    %37 = vector.broadcast %36 : vector<8x1xi1> to vector<8x32xi1>
    %38 = arith.select %37, %31, %3 : vector<8x32xi1>, vector<8x32xf32>
    %c0_11 = arith.constant 0 : index
    %c0_12 = arith.constant 0 : index
    %39 = vector.load %arg7[%c0_11, %c0_12] : memref<8x32xf32, #tpu.memory_space<vmem>>, vector<8x32xf32>
    tpu.vector_store %arg7[%c0_11, %c0_12], %38 {strides = array<i32>} : memref<8x32xf32, #tpu.memory_space<vmem>>, vector<8x32xf32>,
    %40 = vector.shape_cast %35 : vector<8x1xi1> to vector<8x1xi1>
    %41 = vector.broadcast %40 : vector<8x1xi1> to vector<8x32xi1>
    %42 = arith.select %41, %29, %4 : vector<8x32xi1>, vector<8x32xf32>
    %c0_13 = arith.constant 0 : index
    %c0_14 = arith.constant 0 : index
    %43 = vector.load %arg8[%c0_13, %c0_14] : memref<8x32xf32, #tpu.memory_space<vmem>>, vector<8x32xf32>
    tpu.vector_store %arg8[%c0_13, %c0_14], %42 {strides = array<i32>} : memref<8x32xf32, #tpu.memory_space<vmem>>, vector<8x32xf32>,
    %c0_i32_15 = arith.constant 0 : i32
    %44 = arith.cmpi sgt, %arg0, %c0_i32_15 : i32
    %45 = arith.extui %44 : i1 to i32
    %c0_i32_16 = arith.constant 0 : i32
    %46 = arith.cmpi ne, %45, %c0_i32_16 : i32
    scf.if %46 {
      %47 = arith.truncf %31 : vector<8x32xf32> to vector<8x32xbf16>
      %c0_17 = arith.constant 0 : index
      %c0_18 = arith.constant 0 : index
      %48 = vector.load %arg4[%c0_17, %c0_18] : memref<32x128xbf16, #tpu.memory_space<vmem>>, vector<32x128xbf16>
      %cst_19 = arith.constant dense<0.000000e+00> : vector<8x128xf32>
      %49 = tpu.matmul %47, %48, %cst_19 {dimension_numbers = #tpu.dot_dimension_numbers<[1], [0], [0], [1], [0, 0, 1, 1], [], []>} : vector<8x32xbf16>, vector<32x128xbf16>, vector<8x128xf32> -> vector<8x128xf32>
      %c0_20 = arith.constant 0 : index
      %c0_21 = arith.constant 0 : index
      %50 = vector.load %arg5[%c0_20, %c0_21] : memref<1x128xf32, #tpu.memory_space<vmem>>, vector<1x128xf32>
      %51 = vector.broadcast %50 : vector<1x128xf32> to vector<8x128xf32>
      %52 = arith.addf %49, %51 : vector<8x128xf32>
      %cst_22 = arith.constant 0.000000e+00 : f32
      %53 = vector.shape_cast %35 : vector<8x1xi1> to vector<8x1xi1>
      %54 = vector.broadcast %53 : vector<8x1xi1> to vector<8x128xi1>
      %55 = vector.broadcast %cst_22 : f32 to vector<8x128xf32>
      %56 = arith.select %54, %52, %55 : vector<8x128xi1>, vector<8x128xf32>
      %c0_23 = arith.constant 0 : index
      %c0_24 = arith.constant 0 : index
      %57 = vector.load %arg6[%c0_23, %c0_24] : memref<8x128xf32, #tpu.memory_space<vmem>>, vector<8x128xf32>
      tpu.vector_store %arg6[%c0_23, %c0_24], %56 {strides = array<i32>} : memref<8x128xf32, #tpu.memory_space<vmem>>, vector<8x128xf32>,
    } else {
    }
    return
  }
  func.func @transform_0(%arg0: i32) -> (i32, i32) {
    %c0_i32 = arith.constant 0 : i32
    %c0_i32_0 = arith.constant 0 : i32
    return %arg0, %c0_i32 : i32, i32
  }
  func.func @transform_1(%arg0: i32) -> (i32, i32) {
    %c0_i32 = arith.constant 0 : i32
    %c0_i32_0 = arith.constant 0 : i32
    %c0_i32_1 = arith.constant 0 : i32
    return %c0_i32, %c0_i32_0 : i32, i32
  }
  func.func @transform_2(%arg0: i32) -> (i32, i32) {
    %c0_i32 = arith.constant 0 : i32
    %c0_i32_0 = arith.constant 0 : i32
    %c0_i32_1 = arith.constant 0 : i32
    return %c0_i32, %c0_i32_0 : i32, i32
  }
  func.func @transform_3(%arg0: i32) -> (i32, i32) {
    %c0_i32 = arith.constant 0 : i32
    %c0_i32_0 = arith.constant 0 : i32
    %c0_i32_1 = arith.constant 0 : i32
    return %c0_i32, %c0_i32_0 : i32, i32
  }
  func.func @transform_4(%arg0: i32) -> (i32, i32) {
    %c0_i32 = arith.constant 0 : i32
    %c0_i32_0 = arith.constant 0 : i32
    %c0_i32_1 = arith.constant 0 : i32
    return %c0_i32, %c0_i32_0 : i32, i32
  }
  func.func @transform_5(%arg0: i32) -> (i32, i32) {
    %c1_i32 = arith.constant 1 : i32
    %0 = arith.subi %arg0, %c1_i32 : i32
    %c0_i32 = arith.constant 0 : i32
    %1 = arith.maxsi %0, %c0_i32 : i32
    %c0_i32_0 = arith.constant 0 : i32
    %c0_i32_1 = arith.constant 0 : i32
    return %1, %c0_i32_0 : i32, i32
  }
}

</mosaic_0001>

<llo_original>
// kernel: nic_forward.3
$region0: #{nic_forward.3}
  #allocation0 [shape = 'u32[]', space=smem, size = 0x4, offset = 0x4, fixed_abs, tag = 'smem constant byte address 0x4 - core index']
  #allocation1 [shape = 'u32[144,128]{1,0:T(1,128)}', space=vmem, size = 0x12000, scoped, tag = 'internal scratch']
  #allocation2 [shape = 'f32[8,32]{1,0:T(8,128)}', space=vmem, size = 0x1000, scoped, tag = 'scratch operand']
  #allocation3 [shape = 'f32[8,32]{1,0:T(8,128)}', space=vmem, size = 0x1000, scoped, tag = 'scratch operand']
  %s0 = inlined_call_operand.vmem [shape: f32[64,128], index: 0, kind: input, shape index: {}]
  %s1 = inlined_call_operand.vmem [shape: s32[8,1], index: 1, kind: input, shape index: {}]
  %s2 = inlined_call_operand.vmem [shape: bf16[32,128], index: 2, kind: input, shape index: {}]
  %s3 = inlined_call_operand.vmem [shape: bf16[32,128], index: 3, kind: input, shape index: {}]
  %s4 = inlined_call_operand.vmem [shape: f32[1,128], index: 4, kind: input, shape index: {}]
  %s5 = inlined_call_operand.vmem [shape: f32[56,128], index: 5, kind: output, shape index: {}]
  %s6 = sld [smem:[#allocation0]]
  $region61: #{nic_forward.3} parent=0
    _
  %s8 = ssub.s32 1, %s6
  %s9 = scalar_select 0, %s8, %s6
  loop: start=0, step=1, limit=10
  $region2: #{nic_forward.3} parent=0 // loop_pre_header
    _
  $region3: #{nic_forward.3} parent=0 // loop_header
    %s11 = sphi 0, %s15
    %p12 = scmp.ge.s32.totalorder %s11, 10
    %s21 = sphi 0, %s23
    %s24 = sphi 0, %s21
    %s25 = sphi 0, %s24
    %s41 = sphi 0, %s25
    %s45 = sphi 0, %s45
    %s47 = sphi 0, %s45
    %s48 = sphi 0, %s47
    %s62 = sphi 0, %s48
    %s66 = sphi 0, %s66
    %s68 = sphi 0, %s66
    %s69 = sphi 0, %s68
    %s83 = sphi 0, %s69
    %s87 = sphi 0, %s87
    %s89 = sphi 0, %s87
    %s90 = sphi 0, %s89
    %s104 = sphi 0, %s90
    %s108 = sphi 0, %s108
    %s110 = sphi 0, %s108
    %s111 = sphi 0, %s110
    %s125 = sphi 0, %s111
    %s137 = sphi 0, %s139
    %s140 = sphi 0, %s137
    %s141 = sphi 0, %s140
    %s157 = sphi 0, %s141
  $region4: #{nic_forward.3} parent=0 // loop_header_branch
    %14 = sbr.rel (%p12) target = $region8
  $region5: #{nic_forward.3} parent=0 // loop_body
    %s16 = ssub.s32 %s11, 1
    %s17 = ssub.s32 %s11, 2
    %s18 = sadd.s32 %s11, 1
    %s19 = ssub.s32 %s11, %s18
    %p20 = scmp.eq.s32.totalorder %s19, 0
    %s22 = sadd.s32 %s21, 1
    %s23 = scalar_select %p20, %s21, %s22
    %p26 = pneg %p20
    %p27 = scmp.eq.s32.totalorder %s11, 7
    %p28 = por %p26, %p27
    %p29 = scmp.ne.s32.totalorder %s21, %s24
    %p30 = scmp.eq.s32.totalorder %s11, 0
    %p31 = por %p29, %p30
    %p32 = scmp.ne.s32.totalorder %s21, %s24
    %p33 = scmp.eq.s32.totalorder %s16, 7
    %p34 = por %p32, %p33
    %p35 = scmp.ne.s32.totalorder %s24, %s25
    %p36 = scmp.eq.s32.totalorder %s16, 0
    %p37 = por %p35, %p36
    %p38 = scmp.ne.s32.totalorder %s24, %s25
    %p39 = scmp.eq.s32.totalorder %s17, 7
    %p40 = por %p38, %p39
    %p42 = scmp.ne.s32.totalorder %s25, %s41
    %p43 = scmp.eq.s32.totalorder %s17, 0
    %p44 = por %p42, %p43
    %s46 = sadd.s32 %s45, 1
    %p49 = scmp.eq.s32.totalorder %s11, 7
    %p50 = scmp.ne.s32.totalorder %s45, %s47
    %p51 = scmp.eq.s32.totalorder %s11, 0
    %p52 = por %p50, %p51
    %p53 = scmp.ne.s32.totalorder %s45, %s47
    %p54 = scmp.eq.s32.totalorder %s16, 7
    %p55 = por %p53, %p54
    %p56 = scmp.ne.s32.totalorder %s47, %s48
    %p57 = scmp.eq.s32.totalorder %s16, 0
    %p58 = por %p56, %p57
    %p59 = scmp.ne.s32.totalorder %s47, %s48
    %p60 = scmp.eq.s32.totalorder %s17, 7
    %p61 = por %p59, %p60
    %p63 = scmp.ne.s32.totalorder %s48, %s62
    %p64 = scmp.eq.s32.totalorder %s17, 0
    %p65 = por %p63, %p64
    %s67 = sadd.s32 %s66, 1
    %p70 = scmp.eq.s32.totalorder %s11, 7
    %p71 = scmp.ne.s32.totalorder %s66, %s68
    %p72 = scmp.eq.s32.totalorder %s11, 0
    %p73 = por %p71, %p72
    %p74 = scmp.ne.s32.totalorder %s66, %s68
    %p75 = scmp.eq.s32.totalorder %s16, 7
    %p76 = por %p74, %p75
    %p77 = scmp.ne.s32.totalorder %s68, %s69
    %p78 = scmp.eq.s32.totalorder %s16, 0
    %p79 = por %p77, %p78
    %p80 = scmp.ne.s32.totalorder %s68, %s69
    %p81 = scmp.eq.s32.totalorder %s17, 7
    %p82 = por %p80, %p81
    %p84 = scmp.ne.s32.totalorder %s69, %s83
    %p85 = scmp.eq.s32.totalorder %s17, 0
    %p86 = por %p84, %p85
    %s88 = sadd.s32 %s87, 1
    %p91 = scmp.eq.s32.totalorder %s11, 7
    %p92 = scmp.ne.s32.totalorder %s87, %s89
    %p93 = scmp.eq.s32.totalorder %s11, 0
    %p94 = por %p92, %p93
    %p95 = scmp.ne.s32.totalorder %s87, %s89
    %p96 = scmp.eq.s32.totalorder %s16, 7
    %p97 = por %p95, %p96
    %p98 = scmp.ne.s32.totalorder %s89, %s90
    %p99 = scmp.eq.s32.totalorder %s16, 0
    %p100 = por %p98, %p99
    %p101 = scmp.ne.s32.totalorder %s89, %s90
    %p102 = scmp.eq.s32.totalorder %s17, 7
    %p103 = por %p101, %p102
    %p105 = scmp.ne.s32.totalorder %s90, %s104
    %p106 = scmp.eq.s32.totalorder %s17, 0
    %p107 = por %p105, %p106
    %s109 = sadd.s32 %s108, 1
    %p112 = scmp.eq.s32.totalorder %s11, 7
    %p113 = scmp.ne.s32.totalorder %s108, %s110
    %p114 = scmp.eq.s32.totalorder %s11, 0
    %p115 = por %p113, %p114
    %p116 = scmp.ne.s32.totalorder %s108, %s110
    %p117 = scmp.eq.s32.totalorder %s16, 7
    %p118 = por %p116, %p117
    %p119 = scmp.ne.s32.totalorder %s110, %s111
    %p120 = scmp.eq.s32.totalorder %s16, 0
    %p121 = por %p119, %p120
    %p122 = scmp.ne.s32.totalorder %s110, %s111
    %p123 = scmp.eq.s32.totalorder %s17, 7
    %p124 = por %p122, %p123
    %p126 = scmp.ne.s32.totalorder %s111, %s125
    %p127 = scmp.eq.s32.totalorder %s17, 0
    %p128 = por %p126, %p127
    %s129 = ssub.s32 %s11, 1
    %p130 = scmp.gt.s32.totalorder %s129, 0
    %s131 = scalar_select %p130, %s129, 0
    %s132 = ssub.s32 %s18, 1
    %p133 = scmp.gt.s32.totalorder %s132, 0
    %s134 = scalar_select %p133, %s132, 0
    %s135 = ssub.s32 %s131, %s134
    %p136 = scmp.eq.s32.totalorder %s135, 0
    %s138 = sadd.s32 %s137, 1
    %s139 = scalar_select %p136, %s137, %s138
    %p142 = pneg %p136
    %p143 = scmp.eq.s32.totalorder %s11, 7
    %p144 = por %p142, %p143
    %p145 = scmp.ne.s32.totalorder %s137, %s140
    %p146 = scmp.eq.s32.totalorder %s11, 0
    %p147 = por %p145, %p146
    %p148 = scmp.ne.s32.totalorder %s137, %s140
    %p149 = scmp.eq.s32.totalorder %s16, 7
    %p150 = por %p148, %p149
    %p151 = scmp.ne.s32.totalorder %s140, %s141
    %p152 = scmp.eq.s32.totalorder %s16, 0
    %p153 = por %p151, %p152
    %p154 = scmp.ne.s32.totalorder %s140, %s141
    %p155 = scmp.eq.s32.totalorder %s17, 7
    %p156 = por %p154, %p155
    %p158 = scmp.ne.s32.totalorder %s141, %s157
    %p159 = scmp.eq.s32.totalorder %s17, 0
    %p160 = por %p158, %p159
    %p161 = scmp.le.s32.totalorder 1, %s11
    %p162 = scmp.lt.s32.totalorder %s11, 9
    %p163 = pnand %p161, %p162
    %p164 = pneg %p163
    // Predicated region
    $region9: #{nic_forward.3} parent=5 // pred_check
      _
    $region10: #{nic_forward.3} parent=5 // pred_check_branch
      %166 = sbr.rel (%p163) target = $region12
    $region11: #{nic_forward.3} parent=5 // pred_region
      %s167 = ssub.s32 %s11, 1
      // Predicated region
      $region13: #{nic_forward.3} parent=11 // pred_check
        %p168 = pneg %p58
      $region14: #{nic_forward.3} parent=11 // pred_check_branch
        %170 = sbr.rel (%p168) target = $region16
      $region15: #{nic_forward.3} parent=11 // pred_region
        _
      $region16: #{nic_forward.3} parent=11 // pred_fallthru
        _
      // Predicated region
      $region17: #{nic_forward.3} parent=11 // pred_check
        %p171 = pneg %p79
      $region18: #{nic_forward.3} parent=11 // pred_check_branch
        %173 = sbr.rel (%p171) target = $region20
      $region19: #{nic_forward.3} parent=11 // pred_region
        _
      $region20: #{nic_forward.3} parent=11 // pred_fallthru
        _
      // Predicated region
      $region21: #{nic_forward.3} parent=11 // pred_check
        %p174 = pneg %p100
      $region22: #{nic_forward.3} parent=11 // pred_check_branch
        %176 = sbr.rel (%p174) target = $region24
      $region23: #{nic_forward.3} parent=11 // pred_region
        _
      $region24: #{nic_forward.3} parent=11 // pred_fallthru
        _
      // Predicated region
      $region25: #{nic_forward.3} parent=11 // pred_check
        %p177 = pneg %p121
      $region26: #{nic_forward.3} parent=11 // pred_check_branch
        %179 = sbr.rel (%p177) target = $region28
      $region27: #{nic_forward.3} parent=11 // pred_region
        _
      $region28: #{nic_forward.3} parent=11 // pred_fallthru
        _
    $region12: #{nic_forward.3} parent=5 // pred_fallthru
      _
    %p180 = scmp.lt.s32.totalorder %s11, 8
    // Predicated region
    $region29: #{nic_forward.3} parent=5 // pred_check
      %p181 = pneg %p180
    $region30: #{nic_forward.3} parent=5 // pred_check_branch
      %183 = sbr.rel (%p181) target = $region32
    $region31: #{nic_forward.3} parent=5 // pred_region
      // Predicated region
      $region33: #{nic_forward.3} parent=31 // pred_check
        %p184 = pneg %p31
      $region34: #{nic_forward.3} parent=31 // pred_check_branch
        %186 = sbr.rel (%p184) target = $region36
      $region35: #{nic_forward.3} parent=31 // pred_region
        %p187 = scmp.lt.s32.totalorder %s11, 7
        %s188 = scalar_select %p187, %s11, 7
        %s189 = smul.addr %s188, 8
        %s190 = scalar_lea.vmem %s0, %s189
      $region36: #{nic_forward.3} parent=31 // pred_fallthru
        _
    $region32: #{nic_forward.3} parent=5 // pred_fallthru
      _
    %p191 = scmp.le.s32.totalorder 1, %s11
    %p192 = scmp.lt.s32.totalorder %s11, 9
    %p193 = pnand %p191, %p192
    %p194 = pneg %p193
    // Predicated region
    $region37: #{nic_forward.3} parent=5 // pred_check
      _
    $region38: #{nic_forward.3} parent=5 // pred_check_branch
      %196 = sbr.rel (%p193) target = $region40
    $region39: #{nic_forward.3} parent=5 // pred_region
      %s197 = ssub.s32 %s11, 1
      %p198 = scmp.lt.s32.totalorder %s16, 7
      %s199 = scalar_select %p198, %s16, 7
      %s200 = smul.addr %s199, 8
      %s201 = scalar_lea.vmem %s0, %s200
      %p202 = pneg %p37
      %p203 = pneg %p34
      %p204 = pneg %p58
      %p205 = pneg %p55
      %p206 = pneg %p79
      %p207 = pneg %p76
      %p208 = pneg %p100
      %p209 = pneg %p97
      %p210 = pneg %p121
      %p211 = pneg %p118
      %p212 = pneg %p153
      %p213 = pneg %p150
      %s214 = ssub.s32 %s16, 1
      %p215 = scmp.gt.s32.totalorder %s214, 0
      %s216 = scalar_select %p215, %s214, 0
      %p217 = scmp.lt.s32.totalorder %s216, 6
      %s218 = scalar_select %p217, %s216, 6
      %s219 = smul.addr %s218, 8
      %s220 = scalar_lea.vmem %s5, %s219
      %p221 = scmp.lt.s32.totalorder %s16, 7
      %s222 = scalar_select %p221, %s16, 7
      %s223 = smul.addr %s222, 8
      %s224 = scalar_lea.vmem %s0, %s223
      %s225 = ssub.s32 %s16, 1
      %p226 = scmp.gt.s32.totalorder %s225, 0
      %s227 = scalar_select %p226, %s225, 0
      %p228 = scmp.lt.s32.totalorder %s227, 6
      %s229 = scalar_select %p228, %s227, 6
      %s230 = smul.addr %s229, 8
      %s231 = scalar_lea.vmem %s5, %s230
      %s232 = ssub.s32 %s16, 1
      %p233 = scmp.gt.s32.totalorder %s232, 0
      %s234 = scalar_select %p233, %s232, 0
      %p236 = scmp.eq.s32.totalorder %s16, 0
      // Predicated region
      $region41: #{nic_forward.3} parent=39 // pred_check
        %p237 = pneg %p236
      $region42: #{nic_forward.3} parent=39 // pred_check_branch
        %239 = sbr.rel (%p237) target = $region44
      $region43: #{nic_forward.3} parent=39 // pred_region
        %vm240 = vcmask 261120
        %241 = vst.msk [vmem:[#allocation2] sm:$0xff] %vm240, 0.0
        %242 = vst.msk [vmem:[#allocation3] sm:$0xff] %vm240, 0.0
      $region44: #{nic_forward.3} parent=39 // pred_fallthru
        _
      %v243 = vld [vmem:[#allocation2] sm:$0xff]
      %v244 = vld [vmem:[#allocation3] sm:$0xff]
      %v245 = vld [vmem:[%s224] sm:$0xff]
      %v246 = vpack.c.bf16 %v243, %v243
      %v247 = vld [vmem:[%s2] sm:$0xf]
      %v248 = vld [vmem:[%s2 + $0x4] sm:$0xf]
      %v249 = vld [vmem:[%s2 + $0x8] sm:$0xf]
      %v250 = vld [vmem:[%s2 + $0xc] sm:$0xf]
      %v255 = vunpack.c.l.b16 %v247
      %v256 = vunpack.c.l.b16 %v248
      %v257 = vunpack.c.l.b16 %v249
      %v258 = vunpack.c.l.b16 %v250
      %v259 = vpack.c.b16 %v256, %v255
      %v260 = vpack.c.b16 %v258, %v257
      %vm263 = vcmask 261120
      %v265 = vsel %vm263, %v246, 0
      %267 = vmatprep.subr.bf16.mxu0 0
      %268 = vmatpush1.bf16.msra.mxu0 0
      %269 = vmatprep.subr.bf16.mxu0 0
      %270 = vmatpush1.bf16.msra.mxu0 0
      %271 = vmatprep.subr.bf16.mxu0 0
      %272 = vmatpush1.bf16.msra.mxu0 0
      %273 = vmatprep.subr.bf16.mxu0 0
      %274 = vmatpush1.bf16.msra.mxu0 0
      %275 = vmatprep.subr.bf16.mxu0 0
      %276 = vmatpush1.bf16.msra.mxu0 0
      %277 = vmatprep.subr.bf16.mxu0 0
      %278 = vmatpush1.bf16.msra.mxu0 0
      %279 = vmatprep.subr.bf16.mxu0 0
      %280 = vmatpush1.bf16.msra.mxu0 %v260
      %281 = vmatprep.subr.bf16.mxu0 0
      %282 = vmatpush1.bf16.msra.mxu0 %v259
      %283 = vmatprep.subr.bf16.mxu0 0
      %284 = vmatpush2.bf16.msra.mxu0 0
      %285 = vmatprep.subr.bf16.mxu0 0
      %286 = vmatpush2.bf16.msra.mxu0 0
      %287 = vmatprep.subr.bf16.mxu0 0
      %288 = vmatpush2.bf16.msra.mxu0 0
      %289 = vmatprep.subr.bf16.mxu0 0
      %290 = vmatpush2.bf16.msra.mxu0 0
      %291 = vmatprep.subr.bf16.mxu0 0
      %292 = vmatpush2.bf16.msra.mxu0 0
      %293 = vmatprep.subr.bf16.mxu0 0
      %294 = vmatpush2.bf16.msra.mxu0 0
      %295 = vmatprep.subr.bf16.mxu0 0
      %296 = vmatpush2.bf16.msra.mxu0 0
      %297 = vmatprep.subr.bf16.mxu0 0
      %298 = vmatpush2.bf16.msra.mxu0 0
      %299 = vmatprep.mubr.bf16.mxu0 0
      %300 = vmatmul.mubr.bf16.gmra.mxu0 %v265
      %v301 = vpop.f32.mrf.mxu0
      %v302 = vadd.f32 0.0, %v301
      %v303 = vpop.f32.mrf.mxu0
      %v304 = vpop.f32.mrf.mxu0
      %v305 = vpop.f32.mrf.mxu0
      %306 = vdwg.mxu0
      %v307 = vadd.f32 %v245, %v302
      %v308 = vlaneseq
      %v309 = vand.u32 %v308, 127
      %vm310 = vcmp.ge.s32.totalorder %v309, 64
      %vm311 = vcmp.lt.s32.totalorder %v309, 96
      %vm312 = vmand %vm310, %vm311
      %v313 = vtanh.pop %v307
      %v314 = vxor.u32 %v307, 2147483648
      %v315 = vmul.f32 %v314, 1.442695
      %v316 = vpow.pop %v315
      %v317 = vadd.f32 %v316, 1.0
      %v318 = vrcp.pop %v317
      %v319 = vmul.f32 1.0, %v318
      %v320 = vsel %vm312, %v313, %v319
      %322 = vrot.lane.b32.xlu0 %v244, 32
      %v323 = vpop.permute.xlu0 %322
      %v325 = vmul.f32 %v320, %v323
      %327 = vrot.lane.b32.xlu0 %v320, 64
      %v328 = vpop.permute.xlu0 %327
      %v330 = vmul.f32 %v320, %v328
      %332 = vrot.lane.b32.xlu0 %v330, 32
      %v333 = vpop.permute.xlu0 %332
      %v335 = vadd.f32 %v325, %v333
      %v336 = vtanh.pop %v335
      %338 = vrot.lane.b32.xlu0 %v336, 64
      %v339 = vpop.permute.xlu0 %338
      %v341 = vmul.f32 %v320, %v339
      %v342 = vld [vmem:[%s1] sm:$0xff]
      %s343 = ssub.s32 %s16, 1
      %v344 = vstv %s343
      %vm345 = vcmp.gt.s32.totalorder %v342, %v344
      %v346 = vsel %vm345, 1, 0
      %347 = vset.pattern.permute.xlu0 0
      %348 = vperm.xlu0 %347, %v346
      %v349 = vpop.permute.xlu0 %348
      %vm350 = vcmp.eq.s32.totalorder %v349, 1
      %352 = vrot.lane.b32.xlu0 %v243, 96
      %v353 = vpop.permute.xlu0 %352
      %v355 = vsel %vm350, %v341, %v353
      %357 = vrot.lane.b32.xlu0 %v355, 32
      %v358 = vpop.permute.xlu0 %357
      %360 = vst.msk [vmem:[#allocation2] sm:$0xff] %vm263, %v358
      %v361 = vsel %vm350, %v335, %v323
      %363 = vrot.lane.b32.xlu0 %v361, 96
      %v364 = vpop.permute.xlu0 %363
      %366 = vst.msk [vmem:[#allocation3] sm:$0xff] %vm263, %v364
      %p367 = scmp.gt.s32.totalorder %s16, 0
      // Predicated region
      $region45: #{nic_forward.3} parent=39 // pred_check
        %p368 = pneg %p367
      $region46: #{nic_forward.3} parent=39 // pred_check_branch
        %370 = sbr.rel (%p368) target = $region48
      $region47: #{nic_forward.3} parent=39 // pred_region
        %v371 = vpack.c.bf16 %v341, %v341
        %v372 = vld [vmem:[%s3] sm:$0xf]
        %v373 = vld [vmem:[%s3 + $0x4] sm:$0xf]
        %v374 = vld [vmem:[%s3 + $0x8] sm:$0xf]
        %v375 = vld [vmem:[%s3 + $0xc] sm:$0xf]
        %v376 = vld [vmem:[%s4] sm:$0x1]
        %v378 = vlaneseq
        %v379 = vshrl.u32 %v378, 7
        %v380 = vsub.s32 0, %v379
        %v381 = vrot.slane %v376, %v380
        %384 = vrot.lane.b32.xlu0 %v371, 32
        %v385 = vpop.permute.xlu0 %384
        %v390 = vunpack.c.l.b16 %v372
        %v391 = vunpack.c.l.b16 %v373
        %v392 = vunpack.c.l.b16 %v374
        %v393 = vunpack.c.l.b16 %v375
        %v394 = vpack.c.b16 %v391, %v390
        %v395 = vpack.c.b16 %v393, %v392
        %v399 = vsel %vm263, %v385, 0
        %401 = vmatprep.subr.bf16.mxu0 0
        %402 = vmatpush1.bf16.msra.mxu0 0
        %403 = vmatprep.subr.bf16.mxu0 0
        %404 = vmatpush1.bf16.msra.mxu0 0
        %405 = vmatprep.subr.bf16.mxu0 0
        %406 = vmatpush1.bf16.msra.mxu0 0
        %407 = vmatprep.subr.bf16.mxu0 0
        %408 = vmatpush1.bf16.msra.mxu0 0
        %409 = vmatprep.subr.bf16.mxu0 0
        %410 = vmatpush1.bf16.msra.mxu0 0
        %411 = vmatprep.subr.bf16.mxu0 0
        %412 = vmatpush1.bf16.msra.mxu0 0
        %413 = vmatprep.subr.bf16.mxu0 0
        %414 = vmatpush1.bf16.msra.mxu0 %v395
        %415 = vmatprep.subr.bf16.mxu0 0
        %416 = vmatpush1.bf16.msra.mxu0 %v394
        %417 = vmatprep.subr.bf16.mxu0 0
        %418 = vmatpush2.bf16.msra.mxu0 0
        %419 = vmatprep.subr.bf16.mxu0 0
        %420 = vmatpush2.bf16.msra.mxu0 0
        %421 = vmatprep.subr.bf16.mxu0 0
        %422 = vmatpush2.bf16.msra.mxu0 0
        %423 = vmatprep.subr.bf16.mxu0 0
        %424 = vmatpush2.bf16.msra.mxu0 0
        %425 = vmatprep.subr.bf16.mxu0 0
        %426 = vmatpush2.bf16.msra.mxu0 0
        %427 = vmatprep.subr.bf16.mxu0 0
        %428 = vmatpush2.bf16.msra.mxu0 0
        %429 = vmatprep.subr.bf16.mxu0 0
        %430 = vmatpush2.bf16.msra.mxu0 0
        %431 = vmatprep.subr.bf16.mxu0 0
        %432 = vmatpush2.bf16.msra.mxu0 0
        %433 = vmatprep.mubr.bf16.mxu0 0
        %434 = vmatmul.mubr.bf16.gmra.mxu0 %v399
        %v435 = vpop.f32.mrf.mxu0
        %v436 = vadd.f32 %v381, %v435
        %v437 = vpop.f32.mrf.mxu0
        %v438 = vpop.f32.mrf.mxu0
        %v439 = vpop.f32.mrf.mxu0
        %440 = vdwg.mxu0
        %v441 = vsel %vm350, %v436, 0.0
        %442 = vst [vmem:[%s231] sm:$0xff] %v441
      $region48: #{nic_forward.3} parent=39 // pred_fallthru
        _
      %s443 = ssub.s32 %s16, 1
      %p444 = scmp.gt.s32.totalorder %s443, 0
      %s445 = scalar_select %p444, %s443, 0
      %p446 = scmp.lt.s32.totalorder %s445, 6
      %s447 = scalar_select %p446, %s445, 6
      %s448 = smul.addr %s447, 8
      %s449 = scalar_lea.vmem %s5, %s448
      // Predicated region
      $region49: #{nic_forward.3} parent=39 // pred_check
        %p450 = pneg %p150
      $region50: #{nic_forward.3} parent=39 // pred_check_branch
        %452 = sbr.rel (%p450) target = $region52
      $region51: #{nic_forward.3} parent=39 // pred_region
        %s453 = ssub.s32 %s16, 1
        %p454 = scmp.gt.s32.totalorder %s453, 0
        %s455 = scalar_select %p454, %s453, 0
      $region52: #{nic_forward.3} parent=39 // pred_fallthru
        _
    $region40: #{nic_forward.3} parent=5 // pred_fallthru
      _
    %p456 = scmp.le.s32.totalorder 2, %s11
    // Predicated region
    $region53: #{nic_forward.3} parent=5 // pred_check
      %p457 = pneg %p456
    $region54: #{nic_forward.3} parent=5 // pred_check_branch
      %459 = sbr.rel (%p457) target = $region56
    $region55: #{nic_forward.3} parent=5 // pred_region
      %s460 = ssub.s32 %s11, 2
      // Predicated region
      $region57: #{nic_forward.3} parent=55 // pred_check
        %p461 = pneg %p156
      $region58: #{nic_forward.3} parent=55 // pred_check_branch
        %463 = sbr.rel (%p461) target = $region60
      $region59: #{nic_forward.3} parent=55 // pred_region
        %s464 = ssub.s32 %s17, 1
        %p465 = scmp.gt.s32.totalorder %s464, 0
        %s466 = scalar_select %p465, %s464, 0
        %p467 = scmp.lt.s32.totalorder %s466, 6
        %s468 = scalar_select %p467, %s466, 6
        %s469 = smul.addr %s468, 8
        %s470 = scalar_lea.vmem %s5, %s469
      $region60: #{nic_forward.3} parent=55 // pred_fallthru
        _
    $region56: #{nic_forward.3} parent=5 // pred_fallthru
      _
  $region6: #{nic_forward.3} parent=0 // loop_footer
    %s15 = sadd.s32 1, %s11
  $region7: #{nic_forward.3} parent=0 // loop_footer_branch
    %10 = sbr.rel target = $region3
  $region8: #{nic_forward.3} parent=0 // loop_exit
    _

// kernel: nic_forward.2
$region0: #{nic_forward.2}
  #allocation0 [shape = 'u32[]', space=smem, size = 0x4, offset = 0x4, fixed_abs, tag = 'smem constant byte address 0x4 - core index']
  #allocation1 [shape = 'u32[144,128]{1,0:T(1,128)}', space=vmem, size = 0x12000, scoped, tag = 'internal scratch']
  %s0 = inlined_call_operand.vmem [shape: f32[8,4,256], index: 0, kind: input, shape index: {}]
  %s1 = inlined_call_operand.vmem [shape: f32[4,32], index: 1, kind: input, shape index: {}]
  %s2 = inlined_call_operand.vmem [shape: f32[1,32], index: 2, kind: input, shape index: {}]
  %s3 = inlined_call_operand.vmem [shape: f32[56,32], index: 3, kind: input, shape index: {}]
  %s4 = inlined_call_operand.vmem [shape: f32[32,128], index: 4, kind: input, shape index: {}]
  %s5 = inlined_call_operand.vmem [shape: f32[1,128], index: 5, kind: input, shape index: {}]
  %s6 = inlined_call_operand.vmem [shape: f32[64,128], index: 6, kind: output, shape index: {}]
  %s7 = sld [smem:[#allocation0]]
  $region34: #{nic_forward.2} parent=0
    _
  %s9 = ssub.s32 1, %s7
  %s10 = scalar_select 0, %s9, %s7
  // Predicated region
  $region2: #{nic_forward.2} parent=0 // pred_check
    _
  $region3: #{nic_forward.2} parent=0 // pred_check_branch
    %12 = sbr.rel (0) target = $region5
  $region4: #{nic_forward.2} parent=0 // pred_region
    _
  $region5: #{nic_forward.2} parent=0 // pred_fallthru
    _
  // Predicated region
  $region6: #{nic_forward.2} parent=0 // pred_check
    _
  $region7: #{nic_forward.2} parent=0 // pred_check_branch
    %14 = sbr.rel (0) target = $region9
  $region8: #{nic_forward.2} parent=0 // pred_region
    _
  $region9: #{nic_forward.2} parent=0 // pred_fallthru
    _
  // Predicated region
  $region10: #{nic_forward.2} parent=0 // pred_check
    _
  $region11: #{nic_forward.2} parent=0 // pred_check_branch
    %16 = sbr.rel (0) target = $region13
  $region12: #{nic_forward.2} parent=0 // pred_region
    _
  $region13: #{nic_forward.2} parent=0 // pred_fallthru
    _
  // Predicated region
  $region14: #{nic_forward.2} parent=0 // pred_check
    _
  $region15: #{nic_forward.2} parent=0 // pred_check_branch
    %18 = sbr.rel (0) target = $region17
  $region16: #{nic_forward.2} parent=0 // pred_region
    _
  $region17: #{nic_forward.2} parent=0 // pred_fallthru
    _
  // Predicated region
  $region18: #{nic_forward.2} parent=0 // pred_check
    _
  $region19: #{nic_forward.2} parent=0 // pred_check_branch
    %20 = sbr.rel (0) target = $region21
  $region20: #{nic_forward.2} parent=0 // pred_region
    _
  $region21: #{nic_forward.2} parent=0 // pred_fallthru
    _
  // Predicated region
  $region22: #{nic_forward.2} parent=0 // pred_check
    _
  $region23: #{nic_forward.2} parent=0 // pred_check_branch
    %22 = sbr.rel (0) target = $region25
  $region24: #{nic_forward.2} parent=0 // pred_region
    _
  $region25: #{nic_forward.2} parent=0 // pred_fallthru
    _
  %v23 = vld [vmem:[%s0] sm:$0xff]
  %v24 = vld [vmem:[%s0 + $0x8] sm:$0xff]
  %v25 = vld [vmem:[%s0 + $0x10] sm:$0xff]
  %v26 = vld [vmem:[%s0 + $0x18] sm:$0xff]
  %v27 = vld [vmem:[%s0 + $0x20] sm:$0xff]
  %v28 = vld [vmem:[%s0 + $0x28] sm:$0xff]
  %v29 = vld [vmem:[%s0 + $0x30] sm:$0xff]
  %v30 = vld [vmem:[%s0 + $0x38] sm:$0xff]
  %v39 = vcombine.high %v23, %v23
  %v40 = vcombine.high %v24, %v24
  %v41 = vcombine.high %v25, %v25
  %v42 = vcombine.high %v26, %v26
  %v43 = vcombine.high %v27, %v27
  %v44 = vcombine.high %v28, %v28
  %v45 = vcombine.high %v29, %v29
  %v46 = vcombine.high %v30, %v30
  %vm55 = vcmask 1043456
  %v56 = vsel %vm55, %v23, 0.0
  %v57 = vsel %vm55, %v39, 0.0
  %v58 = vadd.f32 %v56, %v57
  %59 = vadd.xlane.f32.xlu0 %v58
  %v60 = vpop.xlane.xlu0 %59
  %v61 = vsel %vm55, %v24, 0.0
  %v62 = vsel %vm55, %v40, 0.0
  %v63 = vadd.f32 %v61, %v62
  %64 = vadd.xlane.f32.xlu0 %v63
  %v65 = vpop.xlane.xlu0 %64
  %v66 = vsel %vm55, %v25, 0.0
  %v67 = vsel %vm55, %v41, 0.0
  %v68 = vadd.f32 %v66, %v67
  %69 = vadd.xlane.f32.xlu0 %v68
  %v70 = vpop.xlane.xlu0 %69
  %v71 = vsel %vm55, %v26, 0.0
  %v72 = vsel %vm55, %v42, 0.0
  %v73 = vadd.f32 %v71, %v72
  %74 = vadd.xlane.f32.xlu0 %v73
  %v75 = vpop.xlane.xlu0 %74
  %v76 = vsel %vm55, %v27, 0.0
  %v77 = vsel %vm55, %v43, 0.0
  %v78 = vadd.f32 %v76, %v77
  %79 = vadd.xlane.f32.xlu0 %v78
  %v80 = vpop.xlane.xlu0 %79
  %v81 = vsel %vm55, %v28, 0.0
  %v82 = vsel %vm55, %v44, 0.0
  %v83 = vadd.f32 %v81, %v82
  %84 = vadd.xlane.f32.xlu0 %v83
  %v85 = vpop.xlane.xlu0 %84
  %v86 = vsel %vm55, %v29, 0.0
  %v87 = vsel %vm55, %v45, 0.0
  %v88 = vadd.f32 %v86, %v87
  %89 = vadd.xlane.f32.xlu0 %v88
  %v90 = vpop.xlane.xlu0 %89
  %v91 = vsel %vm55, %v30, 0.0
  %v92 = vsel %vm55, %v46, 0.0
  %v93 = vadd.f32 %v91, %v92
  %94 = vadd.xlane.f32.xlu0 %v93
  %v95 = vpop.xlane.xlu0 %94
  %v96 = vld [vmem:[%s1] sm:$0xf]
  %v97 = vld [vmem:[%s2] sm:$0x1]
  %v99 = vlaneseq
  %v100 = vshrl.u32 %v99, 7
  %v101 = vsub.s32 0, %v100
  %v102 = vrot.slane %v97, %v101
  %v112 = vlaneseq
  %v113 = vand.u32 %v112, 127
  %v114 = vlaneseq
  %v115 = vshrl.u32 %v114, 7
  %v116 = vsub.s32 %v113, %v115
  %v117 = vrot.slane %v60, %v116
  %v118 = vlaneseq
  %v119 = vshrl.u32 %v118, 7
  %v120 = vsub.s32 %v113, %v119
  %v121 = vrot.slane %v65, %v120
  %v122 = vlaneseq
  %v123 = vshrl.u32 %v122, 7
  %v124 = vsub.s32 %v113, %v123
  %v125 = vrot.slane %v70, %v124
  %v126 = vlaneseq
  %v127 = vshrl.u32 %v126, 7
  %v128 = vsub.s32 %v113, %v127
  %v129 = vrot.slane %v75, %v128
  %v130 = vlaneseq
  %v131 = vshrl.u32 %v130, 7
  %v132 = vsub.s32 %v113, %v131
  %v133 = vrot.slane %v80, %v132
  %v134 = vlaneseq
  %v135 = vshrl.u32 %v134, 7
  %v136 = vsub.s32 %v113, %v135
  %v137 = vrot.slane %v85, %v136
  %v138 = vlaneseq
  %v139 = vshrl.u32 %v138, 7
  %v140 = vsub.s32 %v113, %v139
  %v141 = vrot.slane %v90, %v140
  %v142 = vlaneseq
  %v143 = vshrl.u32 %v142, 7
  %v144 = vsub.s32 %v113, %v143
  %v145 = vrot.slane %v95, %v144
  %vm146 = vcmask 1041409
  %v147 = vsel %vm146, %v121, %v117
  %vm148 = vcmask 1042434
  %v149 = vsel %vm148, %v125, %v147
  %vm150 = vcmask 1043459
  %v151 = vsel %vm150, %v129, %v149
  %vm152 = vcmask 1044484
  %v153 = vsel %vm152, %v133, %v151
  %vm154 = vcmask 1045509
  %v155 = vsel %vm154, %v137, %v153
  %vm156 = vcmask 1046534
  %v157 = vsel %vm156, %v141, %v155
  %vm158 = vcmask 1047559
  %v159 = vsel %vm158, %v145, %v157
  %vm160 = vcmask 31744
  %v161 = vsel %vm160, %v159, 0
  %v164 = vsel %vm55, %v96, 0
  %166 = vmatprep.subr.mxu0 0.0
  %167 = vmatpush1.msra.mxu0 0.0
  %168 = vmatprep.subr.mxu0 0.0
  %169 = vmatpush1.msra.mxu0 0.0
  %170 = vmatprep.subr.mxu0 0.0
  %171 = vmatpush1.msra.mxu0 0.0
  %172 = vmatprep.subr.mxu0 0.0
  %173 = vmatpush1.msra.mxu0 0.0
  %174 = vmatprep.subr.mxu0 0.0
  %175 = vmatpush1.msra.mxu0 0.0
  %176 = vmatprep.subr.mxu0 0.0
  %177 = vmatpush1.msra.mxu0 0.0
  %178 = vmatprep.subr.mxu0 0.0
  %179 = vmatpush1.msra.mxu0 0.0
  %180 = vmatprep.subr.mxu0 0.0
  %181 = vmatpush1.msra.mxu0 0.0
  %182 = vmatprep.subr.mxu0 0.0
  %183 = vmatpush1.msra.mxu0 0.0
  %184 = vmatprep.subr.mxu0 0.0
  %185 = vmatpush1.msra.mxu0 0.0
  %186 = vmatprep.subr.mxu0 0.0
  %187 = vmatpush1.msra.mxu0 0.0
  %188 = vmatprep.subr.mxu0 0.0
  %189 = vmatpush1.msra.mxu0 0.0
  %190 = vmatprep.subr.mxu0 0.0
  %191 = vmatpush1.msra.mxu0 0.0
  %192 = vmatprep.subr.mxu0 0.0
  %193 = vmatpush1.msra.mxu0 0.0
  %194 = vmatprep.subr.mxu0 0.0
  %195 = vmatpush1.msra.mxu0 0.0
  %196 = vmatprep.subr.mxu0 0.0
  %197 = vmatpush1.msra.mxu0 %v164
  %198 = vmatprep.subr.mxu0 0.0
  %199 = vmatpush2.msra.mxu0 0.0
  %200 = vmatprep.subr.mxu0 0.0
  %201 = vmatpush2.msra.mxu0 0.0
  %202 = vmatprep.subr.mxu0 0.0
  %203 = vmatpush2.msra.mxu0 0.0
  %204 = vmatprep.subr.mxu0 0.0
  %205 = vmatpush2.msra.mxu0 0.0
  %206 = vmatprep.subr.mxu0 0.0
  %207 = vmatpush2.msra.mxu0 0.0
  %208 = vmatprep.subr.mxu0 0.0
  %209 = vmatpush2.msra.mxu0 0.0
  %210 = vmatprep.subr.mxu0 0.0
  %211 = vmatpush2.msra.mxu0 0.0
  %212 = vmatprep.subr.mxu0 0.0
  %213 = vmatpush2.msra.mxu0 0.0
  %214 = vmatprep.subr.mxu0 0.0
  %215 = vmatpush2.msra.mxu0 0.0
  %216 = vmatprep.subr.mxu0 0.0
  %217 = vmatpush2.msra.mxu0 0.0
  %218 = vmatprep.subr.mxu0 0.0
  %219 = vmatpush2.msra.mxu0 0.0
  %220 = vmatprep.subr.mxu0 0.0
  %221 = vmatpush2.msra.mxu0 0.0
  %222 = vmatprep.subr.mxu0 0.0
  %223 = vmatpush2.msra.mxu0 0.0
  %224 = vmatprep.subr.mxu0 0.0
  %225 = vmatpush2.msra.mxu0 0.0
  %226 = vmatprep.subr.mxu0 0.0
  %227 = vmatpush2.msra.mxu0 0.0
  %228 = vmatprep.subr.mxu0 0.0
  %229 = vmatpush2.msra.mxu0 0.0
  %230 = vmatprep.mubr.f32.mxu0 0.0
  %231 = vmatmul.mubr.f32.gmra.mxu0 %v161
  %v232 = vpop.f32.mrf.mxu0
  %v233 = vadd.f32 %v102, %v232
  %v234 = vpop.f32.mrf.mxu0
  %235 = vdwg.mxu0
  %v236 = vld [vmem:[%s5] sm:$0x1]
  %v237 = vld [vmem:[%s4] sm:$0xff]
  %v238 = vld [vmem:[%s4 + $0x8] sm:$0xff]
  %v239 = vld [vmem:[%s4 + $0x10] sm:$0xff]
  %v240 = vld [vmem:[%s4 + $0x18] sm:$0xff]
  %v242 = vlaneseq
  %v243 = vshrl.u32 %v242, 7
  %v244 = vsub.s32 0, %v243
  %v245 = vrot.slane %v236, %v244
  %vm247 = vcmask 261120
  %v249 = vsel %vm247, %v233, 0
  %251 = vmatprep.subr.mxu0 0.0
  %252 = vmatpush1.msra.mxu0 0.0
  %253 = vmatprep.subr.mxu0 0.0
  %254 = vmatpush1.msra.mxu0 0.0
  %255 = vmatprep.subr.mxu0 0.0
  %256 = vmatpush1.msra.mxu0 0.0
  %257 = vmatprep.subr.mxu0 0.0
  %258 = vmatpush1.msra.mxu0 0.0
  %259 = vmatprep.subr.mxu0 0.0
  %260 = vmatpush1.msra.mxu0 0.0
  %261 = vmatprep.subr.mxu0 0.0
  %262 = vmatpush1.msra.mxu0 0.0
  %263 = vmatprep.subr.mxu0 0.0
  %264 = vmatpush1.msra.mxu0 0.0
  %265 = vmatprep.subr.mxu0 0.0
  %266 = vmatpush1.msra.mxu0 0.0
  %267 = vmatprep.subr.mxu0 0.0
  %268 = vmatpush1.msra.mxu0 0.0
  %269 = vmatprep.subr.mxu0 0.0
  %270 = vmatpush1.msra.mxu0 0.0
  %271 = vmatprep.subr.mxu0 0.0
  %272 = vmatpush1.msra.mxu0 0.0
  %273 = vmatprep.subr.mxu0 0.0
  %274 = vmatpush1.msra.mxu0 0.0
  %275 = vmatprep.subr.mxu0 0.0
  %276 = vmatpush1.msra.mxu0 %v240
  %277 = vmatprep.subr.mxu0 0.0
  %278 = vmatpush1.msra.mxu0 %v239
  %279 = vmatprep.subr.mxu0 0.0
  %280 = vmatpush1.msra.mxu0 %v238
  %281 = vmatprep.subr.mxu0 0.0
  %282 = vmatpush1.msra.mxu0 %v237
  %283 = vmatprep.subr.mxu0 0.0
  %284 = vmatpush2.msra.mxu0 0.0
  %285 = vmatprep.subr.mxu0 0.0
  %286 = vmatpush2.msra.mxu0 0.0
  %287 = vmatprep.subr.mxu0 0.0
  %288 = vmatpush2.msra.mxu0 0.0
  %289 = vmatprep.subr.mxu0 0.0
  %290 = vmatpush2.msra.mxu0 0.0
  %291 = vmatprep.subr.mxu0 0.0
  %292 = vmatpush2.msra.mxu0 0.0
  %293 = vmatprep.subr.mxu0 0.0
  %294 = vmatpush2.msra.mxu0 0.0
  %295 = vmatprep.subr.mxu0 0.0
  %296 = vmatpush2.msra.mxu0 0.0
  %297 = vmatprep.subr.mxu0 0.0
  %298 = vmatpush2.msra.mxu0 0.0
  %299 = vmatprep.subr.mxu0 0.0
  %300 = vmatpush2.msra.mxu0 0.0
  %301 = vmatprep.subr.mxu0 0.0
  %302 = vmatpush2.msra.mxu0 0.0
  %303 = vmatprep.subr.mxu0 0.0
  %304 = vmatpush2.msra.mxu0 0.0
  %305 = vmatprep.subr.mxu0 0.0
  %306 = vmatpush2.msra.mxu0 0.0
  %307 = vmatprep.subr.mxu0 0.0
  %308 = vmatpush2.msra.mxu0 0.0
  %309 = vmatprep.subr.mxu0 0.0
  %310 = vmatpush2.msra.mxu0 0.0
  %311 = vmatprep.subr.mxu0 0.0
  %312 = vmatpush2.msra.mxu0 0.0
  %313 = vmatprep.subr.mxu0 0.0
  %314 = vmatpush2.msra.mxu0 0.0
  %315 = vmatprep.mubr.f32.mxu0 0.0
  %316 = vmatmul.mubr.f32.gmra.mxu0 %v249
  %v317 = vpop.f32.mrf.mxu0
  %v318 = vadd.f32 %v245, %v317
  %v319 = vpop.f32.mrf.mxu0
  %320 = vdwg.mxu0
  %321 = vst [vmem:[%s6] sm:$0xff] %v318
  %v322 = vld [vmem:[%s3] sm:$0xff]
  %v323 = vld [vmem:[%s3 + $0x8] sm:$0xff]
  %v324 = vld [vmem:[%s3 + $0x10] sm:$0xff]
  %v325 = vld [vmem:[%s3 + $0x18] sm:$0xff]
  %v326 = vld [vmem:[%s3 + $0x20] sm:$0xff]
  %v327 = vld [vmem:[%s3 + $0x28] sm:$0xff]
  %v328 = vld [vmem:[%s3 + $0x30] sm:$0xff]
  %v329 = vld [vmem:[%s4] sm:$0xff]
  %v330 = vld [vmem:[%s4 + $0x8] sm:$0xff]
  %v331 = vld [vmem:[%s4 + $0x10] sm:$0xff]
  %v332 = vld [vmem:[%s4 + $0x18] sm:$0xff]
  %v334 = vsel %vm247, %v322, 0
  %v337 = vsel %vm247, %v323, 0
  %v340 = vsel %vm247, %v324, 0
  %v343 = vsel %vm247, %v325, 0
  %v346 = vsel %vm247, %v326, 0
  %v349 = vsel %vm247, %v327, 0
  %v352 = vsel %vm247, %v328, 0
  %354 = vmatprep.subr.mxu0 0.0
  %355 = vmatpush1.msra.mxu0 0.0
  %356 = vmatprep.subr.mxu0 0.0
  %357 = vmatpush1.msra.mxu0 0.0
  %358 = vmatprep.subr.mxu0 0.0
  %359 = vmatpush1.msra.mxu0 0.0
  %360 = vmatprep.subr.mxu0 0.0
  %361 = vmatpush1.msra.mxu0 0.0
  %362 = vmatprep.subr.mxu0 0.0
  %363 = vmatpush1.msra.mxu0 0.0
  %364 = vmatprep.subr.mxu0 0.0
  %365 = vmatpush1.msra.mxu0 0.0
  %366 = vmatprep.subr.mxu0 0.0
  %367 = vmatpush1.msra.mxu0 0.0
  %368 = vmatprep.subr.mxu0 0.0
  %369 = vmatpush1.msra.mxu0 0.0
  %370 = vmatprep.subr.mxu0 0.0
  %371 = vmatpush1.msra.mxu0 0.0
  %372 = vmatprep.subr.mxu0 0.0
  %373 = vmatpush1.msra.mxu0 0.0
  %374 = vmatprep.subr.mxu0 0.0
  %375 = vmatpush1.msra.mxu0 0.0
  %376 = vmatprep.subr.mxu0 0.0
  %377 = vmatpush1.msra.mxu0 0.0
  %378 = vmatprep.subr.mxu0 0.0
  %379 = vmatpush1.msra.mxu0 %v332
  %380 = vmatprep.subr.mxu0 0.0
  %381 = vmatpush1.msra.mxu0 %v331
  %382 = vmatprep.subr.mxu0 0.0
  %383 = vmatpush1.msra.mxu0 %v330
  %384 = vmatprep.subr.mxu0 0.0
  %385 = vmatpush1.msra.mxu0 %v329
  %386 = vmatprep.subr.mxu0 0.0
  %387 = vmatpush2.msra.mxu0 0.0
  %388 = vmatprep.subr.mxu0 0.0
  %389 = vmatpush2.msra.mxu0 0.0
  %390 = vmatprep.subr.mxu0 0.0
  %391 = vmatpush2.msra.mxu0 0.0
  %392 = vmatprep.subr.mxu0 0.0
  %393 = vmatpush2.msra.mxu0 0.0
  %394 = vmatprep.subr.mxu0 0.0
  %395 = vmatpush2.msra.mxu0 0.0
  %396 = vmatprep.subr.mxu0 0.0
  %397 = vmatpush2.msra.mxu0 0.0
  %398 = vmatprep.subr.mxu0 0.0
  %399 = vmatpush2.msra.mxu0 0.0
  %400 = vmatprep.subr.mxu0 0.0
  %401 = vmatpush2.msra.mxu0 0.0
  %402 = vmatprep.subr.mxu0 0.0
  %403 = vmatpush2.msra.mxu0 0.0
  %404 = vmatprep.subr.mxu0 0.0
  %405 = vmatpush2.msra.mxu0 0.0
  %406 = vmatprep.subr.mxu0 0.0
  %407 = vmatpush2.msra.mxu0 0.0
  %408 = vmatprep.subr.mxu0 0.0
  %409 = vmatpush2.msra.mxu0 0.0
  %410 = vmatprep.subr.mxu0 0.0
  %411 = vmatpush2.msra.mxu0 0.0
  %412 = vmatprep.subr.mxu0 0.0
  %413 = vmatpush2.msra.mxu0 0.0
  %414 = vmatprep.subr.mxu0 0.0
  %415 = vmatpush2.msra.mxu0 0.0
  %416 = vmatprep.subr.mxu0 0.0
  %417 = vmatpush2.msra.mxu0 0.0
  %418 = vmatprep.mubr.f32.mxu0 0.0
  %419 = vmatmul.mubr.f32.gmra.mxu0 %v334
  %v420 = vpop.f32.mrf.mxu0
  %v421 = vadd.f32 %v245, %v420
  %v422 = vpop.f32.mrf.mxu0
  %423 = vmatprep.mubr.f32.mxu0 0.0
  %424 = vmatmul.mubr.f32.gmra.mxu0 %v337
  %v425 = vpop.f32.mrf.mxu0
  %v426 = vadd.f32 %v245, %v425
  %v427 = vpop.f32.mrf.mxu0
  %428 = vmatprep.mubr.f32.mxu0 0.0
  %429 = vmatmul.mubr.f32.gmra.mxu0 %v340
  %v430 = vpop.f32.mrf.mxu0
  %v431 = vadd.f32 %v245, %v430
  %v432 = vpop.f32.mrf.mxu0
  %433 = vmatprep.mubr.f32.mxu0 0.0
  %434 = vmatmul.mubr.f32.gmra.mxu0 %v343
  %v435 = vpop.f32.mrf.mxu0
  %v436 = vadd.f32 %v245, %v435
  %v437 = vpop.f32.mrf.mxu0
  %438 = vmatprep.mubr.f32.mxu0 0.0
  %439 = vmatmul.mubr.f32.gmra.mxu0 %v346
  %v440 = vpop.f32.mrf.mxu0
  %v441 = vadd.f32 %v245, %v440
  %v442 = vpop.f32.mrf.mxu0
  %443 = vmatprep.mubr.f32.mxu0 0.0
  %444 = vmatmul.mubr.f32.gmra.mxu0 %v349
  %v445 = vpop.f32.mrf.mxu0
  %v446 = vadd.f32 %v245, %v445
  %v447 = vpop.f32.mrf.mxu0
  %448 = vmatprep.mubr.f32.mxu0 0.0
  %449 = vmatmul.mubr.f32.gmra.mxu0 %v352
  %v450 = vpop.f32.mrf.mxu0
  %v451 = vadd.f32 %v245, %v450
  %v452 = vpop.f32.mrf.mxu0
  %453 = vdwg.mxu0
  %454 = vst [vmem:[%s6 + $0x8] sm:$0xff] %v421
  %455 = vst [vmem:[%s6 + $0x10] sm:$0xff] %v426
  %456 = vst [vmem:[%s6 + $0x18] sm:$0xff] %v431
  %457 = vst [vmem:[%s6 + $0x20] sm:$0xff] %v436
  %458 = vst [vmem:[%s6 + $0x28] sm:$0xff] %v441
  %459 = vst [vmem:[%s6 + $0x30] sm:$0xff] %v446
  %460 = vst [vmem:[%s6 + $0x38] sm:$0xff] %v451
  // Predicated region
  $region26: #{nic_forward.2} parent=0 // pred_check
    _
  $region27: #{nic_forward.2} parent=0 // pred_check_branch
    %462 = sbr.rel (0) target = $region29
  $region28: #{nic_forward.2} parent=0 // pred_region
    _
  $region29: #{nic_forward.2} parent=0 // pred_fallthru
    _
  // Predicated region
  $region30: #{nic_forward.2} parent=0 // pred_check
    _
  $region31: #{nic_forward.2} parent=0 // pred_check_branch
    %464 = sbr.rel (0) target = $region33
  $region32: #{nic_forward.2} parent=0 // pred_region
    _
  $region33: #{nic_forward.2} parent=0 // pred_fallthru
    _

</llo_original>
